<compile_context>
chip_gen: v6e
topology: v6e:2x2x1
jax: 0.10.0
libtpu: 0.0.40
codegen_flags: <defaults>
</compile_context>

<pallas_src>
import functools
import numpy as np

import jax
import jax.numpy as jnp
from jax import lax
from jax.experimental import pallas as pl


# ------------------------------ helpers ------------------------------------

def _full_spec(shape):
    """BlockSpec covering the full (small) array, single grid step."""
    ndim = len(shape)

    def idx(i):
        return (0,) * ndim

    return pl.BlockSpec(shape, idx)


# ----------------------------- Pallas kernels ------------------------------

def _concat_linear_kernel(*refs, n_streams, relu):
    """y = relu(sum_i x_i @ W_i + b)  — concat fusion without materializing concat."""
    o_ref = refs[-1]
    stream_refs = refs[:n_streams]
    w_refs = refs[n_streams:2 * n_streams]
    b_ref = refs[2 * n_streams]

    acc = jnp.dot(stream_refs[0][...], w_refs[0][...],
                  preferred_element_type=jnp.float32)
    for i in range(1, n_streams):
        acc = acc + jnp.dot(stream_refs[i][...], w_refs[i][...],
                            preferred_element_type=jnp.float32)
    acc = acc + b_ref[...]
    if relu:
        acc = jnp.maximum(acc, 0.0)
    o_ref[...] = acc.astype(o_ref.dtype)


def _mean_fusion_kernel(*refs, n_streams, has_linear):
    """mean over streams, then optional Linear (Identity case: no matmul at all)."""
    o_ref = refs[-1]
    stream_refs = refs[:n_streams]

    total = stream_refs[0][...].astype(jnp.float32)
    for i in range(1, n_streams):
        total = total + stream_refs[i][...].astype(jnp.float32)
    mean = total * (1.0 / float(n_streams))

    if has_linear:
        w_ref = refs[n_streams]
        b_ref = refs[n_streams + 1]
        y = jnp.dot(mean, w_ref[...], preferred_element_type=jnp.float32) + b_ref[...]
    else:
        y = mean
    o_ref[...] = y.astype(o_ref.dtype)


def _attention_fusion_kernel(*refs, n_streams, has_proj, num_heads, head_dim,
                             has_final):
    """Fully fused attention fusion path.

    Inputs (in order): streams..., [proj_w, proj_b for projected streams]...,
    Wqkv, bqkv, Wo, bo, ln_gamma, ln_beta, sel (D,H), selT (H,D), [Wf, bf].
    All heads are processed at once via the 0/1 block-diagonal selector matrices.
    """
    o_ref = refs[-1]
    it = iter(refs[:-1])
    stream_refs = [next(it) for _ in range(n_streams)]
    proj = []
    for flag in has_proj:
        proj.append((next(it), next(it)) if flag else None)
    wqkv_ref = next(it); bqkv_ref = next(it)
    wo_ref = next(it);   bo_ref = next(it)
    g_ref = next(it);    beta_ref = next(it)
    sel_ref = next(it);  selT_ref = next(it)
    if has_final:
        fw_ref = next(it); fb_ref = next(it)

    D = wqkv_ref.shape[0]
    S = n_streams
    scale = 1.0 / float(np.sqrt(head_dim))

    wqkv = wqkv_ref[...]
    bqkv = bqkv_ref[...]
    sel = sel_ref[...]        # (D, H): 1 iff lane d belongs to head h
    selT = selT_ref[...]      # (H, D)
    wo = wo_ref[...]
    bo = bo_ref[...]
    g = g_ref[...]
    bt = beta_ref[...]

    # ---- per-stream projection + fused QKV (all batch rows at once) ----
    xs, qs, ks, vs = [], [], [], []
    for s_ref, p in zip(stream_refs, proj):
        s = s_ref[...].astype(jnp.float32)
        if p is None:
            x = s
        else:
            x = jnp.dot(s, p[0][...], preferred_element_type=jnp.float32) + p[1][...]
        qkv = jnp.dot(x, wqkv, preferred_element_type=jnp.float32) + bqkv   # (B, 3D)
        xs.append(x)
        qs.append(qkv[:, :D])
        ks.append(qkv[:, D:2 * D])
        vs.append(qkv[:, 2 * D:])

    # ---- attention scores for all heads at once: (q_i*k_j) @ sel -> (B, H) ----
    scores = [[jnp.dot(qs[i] * ks[j], sel, preferred_element_type=jnp.float32) * scale
               for j in range(S)] for i in range(S)]

    # ---- per query-stream: softmax over key streams, weighted sum of V,
    #      output projection, residual, LayerNorm; accumulate the mean pool ----
    pooled = None
    for i in range(S):
        m = scores[i][0]
        for j in range(1, S):
            m = jnp.maximum(m, scores[i][j])
        ps = [jnp.exp(scores[i][j] - m) for j in range(S)]
        denom = ps[0]
        for j in range(1, S):
            denom = denom + ps[j]
        inv = pl.reciprocal(denom, approx=True)                 # EUP slot

        attn = None
        for j in range(S):
            # broadcast per-head weight to that head's lanes: (B,H) @ (H,D)
            w_lane = jnp.dot(ps[j] * inv, selT, preferred_element_type=jnp.float32)
            contrib = w_lane * vs[j]
            attn = contrib if attn is None else attn + contrib

        attn = jnp.dot(attn, wo, preferred_element_type=jnp.float32) + bo
        res = xs[i] + attn
        mu = jnp.mean(res, axis=-1, keepdims=True)
        var = jnp.mean((res - mu) ** 2, axis=-1, keepdims=True)
        normed = (res - mu) * lax.rsqrt(var + 1e-5) * g + bt
        pooled = normed if pooled is None else pooled + normed

    pooled = pooled * (1.0 / float(S))
    if has_final:
        pooled = jnp.dot(pooled, fw_ref[...],
                         preferred_element_type=jnp.float32) + fb_ref[...]
    o_ref[...] = pooled.astype(o_ref.dtype)


# ----------------------------- kernel wrappers ------------------------------

def concat_fused_linear(streams, w_slices, b, out_dim, *, relu=True):
    n = len(streams)
    B = streams[0].shape[0]
    args = list(streams) + list(w_slices) + [b]
    return pl.pallas_call(
        functools.partial(_concat_linear_kernel, n_streams=n, relu=relu),
        out_shape=jax.ShapeDtypeStruct((B, out_dim), jnp.float32),
        grid=(1,),
        in_specs=[_full_spec(a.shape) for a in args],
        out_specs=_full_spec((B, out_dim)),
    )(*args)


def mean_fusion(streams, w_t, b, out_dim):
    n = len(streams)
    B = streams[0].shape[0]
    has_linear = w_t is not None
    args = list(streams) + ([w_t, b] if has_linear else [])
    return pl.pallas_call(
        functools.partial(_mean_fusion_kernel, n_streams=n, has_linear=has_linear),
        out_shape=jax.ShapeDtypeStruct((B, out_dim), jnp.float32),
        grid=(1,),
        in_specs=[_full_spec(a.shape) for a in args],
        out_specs=_full_spec((B, out_dim)),
    )(*args)


def attention_fusion(streams, proj_params, wqkv_t, bqkv, wo_t, bo, gamma, beta,
                     sel, selT, final_params, *, num_heads):
    n = len(streams)
    B = streams[0].shape[0]
    D = wqkv_t.shape[0]
    hd = D // num_heads
    has_proj = tuple(p is not None for p in proj_params)
    has_final = final_params is not None
    out_dim = final_params[0].shape[1] if has_final else D

    args = list(streams)
    for p in proj_params:
        if p is not None:
            args.extend(p)
    args += [wqkv_t, bqkv, wo_t, bo, gamma, beta, sel, selT]
    if has_final:
        args.extend(final_params)

    kernel = functools.partial(_attention_fusion_kernel, n_streams=n,
                               has_proj=has_proj, num_heads=num_heads,
                               head_dim=hd, has_final=has_final)
    return pl.pallas_call(
        kernel,
        out_shape=jax.ShapeDtypeStruct((B, out_dim), jnp.float32),
        grid=(1,),
        in_specs=[_full_spec(a.shape) for a in args],
        out_specs=_full_spec((B, out_dim)),
    )(*args)


# ----------------------------- StreamFusion --------------------------------

class StreamFusionPallas:
    """JAX/Pallas port of StreamFusion (forward-pass, eval-mode dropout)."""

    def __init__(self, input_dims, output_dim, fusion_type='concat', key=None):
        self.fusion_type = fusion_type
        self.input_dims = list(input_dims)
        self.output_dim = output_dim
        key = jax.random.PRNGKey(42) if key is None else key

        def lin_init(k, fan_in, fan_out):
            k1, k2 = jax.random.split(k)
            bound = 1.0 / float(np.sqrt(fan_in))
            w = jax.random.uniform(k1, (fan_out, fan_in), jnp.float32, -bound, bound)
            b = jax.random.uniform(k2, (fan_out,), jnp.float32, -bound, bound)
            return w, b

        if fusion_type == 'concat':
            total = sum(input_dims)
            self.w, self.b = lin_init(key, total, output_dim)
            # weight pre-split per stream (transposed) so the kernel never needs
            # the concatenated activation in HBM.
            w_t = self.w.T
            offs = np.cumsum([0] + list(input_dims))
            self.w_slices = [w_t[int(offs[i]):int(offs[i + 1]), :]
                             for i in range(len(input_dims))]
            self.b2d = self.b[None, :]
            # TODO(synk): nn.Dropout after ReLU is identity in eval mode; training-mode
            # dropout is not implemented here.
        elif fusion_type == 'mean':
            assert len(set(input_dims)) == 1, 'all dims must match for mean fusion'
            d = input_dims[0]
            if d != output_dim:
                self.w, self.b = lin_init(key, d, output_dim)
                self.w_t = self.w.T
                self.b2d = self.b[None, :]
            else:  # nn.Identity -> no matmul in the kernel at all
                self.w, self.b = None, None
        elif fusion_type == 'attention':
            D = input_dims[0]
            self.num_heads = 8
            assert D % self.num_heads == 0, 'common_dim must be divisible by 8 heads'
            hd = D // self.num_heads
            keys = jax.random.split(key, len(input_dims) + 3)
            self.projections = []     # PyTorch-layout (for the reference)
            self.proj_kernel = []     # kernel-layout (w^T, b[1,:]) or None
            for i, d in enumerate(input_dims):
                if d == D:
                    self.projections.append(None)
                    self.proj_kernel.append(None)
                else:
                    w, b = lin_init(keys[i], d, D)
                    self.projections.append((w, b))
                    self.proj_kernel.append((w.T, b[None, :]))
            self.in_w, self.in_b = lin_init(keys[-3], D, 3 * D)     # (3D,D),(3D,)
            self.out_w, self.out_b = lin_init(keys[-2], D, D)
            self.ln_g = jnp.ones((D,), jnp.float32)
            self.ln_b = jnp.zeros((D,), jnp.float32)
            # 0/1 block-diagonal head selector: sel[d,h]=1 iff lane d is in head h
            sel = np.zeros((D, self.num_heads), np.float32)
            for h in range(self.num_heads):
                sel[h * hd:(h + 1) * hd, h] = 1.0
            self.sel = jnp.asarray(sel)
            self.selT = jnp.asarray(sel.T)
            if D != output_dim:
                self.fw, self.fb = lin_init(keys[-1], D, output_dim)
                self.final_kernel = (self.fw.T, self.fb[None, :])
            else:
                self.fw, self.fb = None, None
                self.final_kernel = None
        else:
            raise ValueError(f'Unknown fusion type: {fusion_type}')

    def __call__(self, streams):
        if self.fusion_type == 'concat':
            return concat_fused_linear(streams, self.w_slices, self.b2d,
                                       self.output_dim, relu=True)
        if self.fusion_type == 'mean':
            if self.w is None:
                return mean_fusion(streams, None, None, self.output_dim)
            return mean_fusion(streams, self.w_t, self.b2d, self.output_dim)
        # attention: the entire path is a single pallas_call
        return attention_fusion(streams, self.proj_kernel,
                                self.in_w.T, self.in_b[None, :],
                                self.out_w.T, self.out_b[None, :],
                                self.ln_g[None, :], self.ln_b[None, :],
                                self.sel, self.selT, self.final_kernel,
                                num_heads=self.num_heads)


# ----------------------------- pure-JAX reference ---------------------------

def ref_forward(m, streams):
    if m.fusion_type == 'concat':
        x = jnp.concatenate(streams, axis=-1)
        return jax.nn.relu(x @ m.w.T + m.b)
    if m.fusion_type == 'mean':
        avg = jnp.mean(jnp.stack(streams, 0), 0)
        if m.w is None:
            return avg
        return avg @ m.w.T + m.b
    proj = [s if p is None else s @ p[0].T + p[1]
            for s, p in zip(streams, m.projections)]
    x = jnp.stack(proj, axis=1)
    B, S, D = x.shape
    H, hd = m.num_heads, D // m.num_heads
    qkv = x @ m.in_w.T + m.in_b
    q, k, v = jnp.split(qkv, 3, axis=-1)
    sp = lambda t: t.reshape(B, S, H, hd).transpose(0, 2, 1, 3)
    q, k, v = sp(q), sp(k), sp(v)
    sc = jnp.einsum('bhqd,bhkd->bhqk', q, k) / np.sqrt(hd)
    pa = jax.nn.softmax(sc, axis=-1)
    o = jnp.einsum('bhqk,bhkd->bhqd', pa, v).transpose(0, 2, 1, 3).reshape(B, S, D)
    o = o @ m.out_w.T + m.out_b
    res = x + o
    mu = res.mean(-1, keepdims=True)
    var = ((res - mu) ** 2).mean(-1, keepdims=True)
    normed = (res - mu) / jnp.sqrt(var + 1e-5) * m.ln_g + m.ln_b
    pooled = normed.mean(axis=1)
    if m.fw is not None:
        return pooled @ m.fw.T + m.fb
    return pooled


# ----------------------------------- main -----------------------------------

if __name__ == "__main__":
    B = 4
    key = jax.random.PRNGKey(0)
    kc, km, km2, ka, ka2 = jax.random.split(key, 5)

    def check(out, ref, rtol, atol):
        np.testing.assert_allclose(np.asarray(out), np.asarray(ref),
                                   rtol=rtol, atol=atol)

    # concat fusion: dims [32, 48, 16] -> 64 (one fused kernel, no HBM concat)
    dims_c = [32, 48, 16]
    streams_c = [jax.random.normal(k, (B, d), jnp.float32)
                 for k, d in zip(jax.random.split(kc, len(dims_c)), dims_c)]
    m_c = StreamFusionPallas(dims_c, 64, 'concat', key=jax.random.PRNGKey(1))
    out_c = jax.block_until_ready(m_c(streams_c))
    check(out_c, ref_forward(m_c, streams_c), 1e-4, 1e-4)

    # mean fusion with Linear: dims [32, 32, 32] -> 64
    dims_m = [32, 32, 32]
    streams_m = [jax.random.normal(k, (B, d), jnp.float32)
                 for k, d in zip(jax.random.split(km, len(dims_m)), dims_m)]
    m_m = StreamFusionPallas(dims_m, 64, 'mean', key=jax.random.PRNGKey(2))
    out_m = jax.block_until_ready(m_m(streams_m))
    check(out_m, ref_forward(m_m, streams_m), 1e-3, 1e-3)

    # mean fusion with Identity: dims [64, 64, 64] -> 64 (no matmul at all)
    dims_m2 = [64, 64, 64]
    streams_m2 = [jax.random.normal(k, (B, d), jnp.float32)
                  for k, d in zip(jax.random.split(km2, len(dims_m2)), dims_m2)]
    m_m2 = StreamFusionPallas(dims_m2, 64, 'mean', key=jax.random.PRNGKey(4))
    out_m2 = jax.block_until_ready(m_m2(streams_m2))
    check(out_m2, ref_forward(m_m2, streams_m2), 1e-4, 1e-4)

    # attention fusion, Identity final: dims [32, 48, 32], common_dim=32 -> 32
    # (looser tolerance: TPU default f32 matmul precision + fused contraction
    #  order + EUP approx reciprocal in the softmax give small relative deltas)
    dims_a = [32, 48, 32]
    streams_a = [jax.random.normal(k, (B, d), jnp.float32)
                 for k, d in zip(jax.random.split(ka, len(dims_a)), dims_a)]
    m_a = StreamFusionPallas(dims_a, 32, 'attention', key=jax.random.PRNGKey(3))
    out_a = jax.block_until_ready(m_a(streams_a))
    check(out_a, ref_forward(m_a, streams_a), 1e-2, 1e-2)

    # attention fusion with a final Linear: dims [32, 48, 32], common 32 -> 64
    streams_a2 = [jax.random.normal(k, (B, d), jnp.float32)
                  for k, d in zip(jax.random.split(ka2, len(dims_a)), dims_a)]
    m_a2 = StreamFusionPallas(dims_a, 64, 'attention', key=jax.random.PRNGKey(5))
    out_a2 = jax.block_until_ready(m_a2(streams_a2))
    check(out_a2, ref_forward(m_a2, streams_a2), 1e-2, 1e-2)

    print("KERNEL_OK")
</pallas_src>

<mosaic_0001>
module attributes {stable_mosaic.version = 11 : i64} {
  func.func @_concat_linear_kernel(%arg0: i32, %arg1: memref<4x32xf32, #tpu.memory_space<vmem>>, %arg2: memref<4x48xf32, #tpu.memory_space<vmem>>, %arg3: memref<4x16xf32, #tpu.memory_space<vmem>>, %arg4: memref<32x64xf32, #tpu.memory_space<vmem>>, %arg5: memref<48x64xf32, #tpu.memory_space<vmem>>, %arg6: memref<16x64xf32, #tpu.memory_space<vmem>>, %arg7: memref<1x64xf32, #tpu.memory_space<vmem>>, %arg8: memref<4x64xf32, #tpu.memory_space<vmem>>) attributes {dimension_semantics = [#tpu.dimension_semantics<arbitrary>], iteration_bounds = array<i64: 1>, scalar_prefetch = 0 : i64, scratch_operands = 0 : i64, tpu.core_type = #tpu.core_type<tc>, window_params = [{pipeline_mode = #tpu.pipeline_mode<synchronous>, transform_indices = @transform_0, window_bounds = array<i64: 4, 32>}, {pipeline_mode = #tpu.pipeline_mode<synchronous>, transform_indices = @transform_1, window_bounds = array<i64: 4, 48>}, {pipeline_mode = #tpu.pipeline_mode<synchronous>, transform_indices = @transform_2, window_bounds = array<i64: 4, 16>}, {pipeline_mode = #tpu.pipeline_mode<synchronous>, transform_indices = @transform_3, window_bounds = array<i64: 32, 64>}, {pipeline_mode = #tpu.pipeline_mode<synchronous>, transform_indices = @transform_4, window_bounds = array<i64: 48, 64>}, {pipeline_mode = #tpu.pipeline_mode<synchronous>, transform_indices = @transform_5, window_bounds = array<i64: 16, 64>}, {pipeline_mode = #tpu.pipeline_mode<synchronous>, transform_indices = @transform_6, window_bounds = array<i64: 1, 64>}, {pipeline_mode = #tpu.pipeline_mode<synchronous>, transform_indices = @transform_7, window_bounds = array<i64: 4, 64>}]} {
    %c0 = arith.constant 0 : index
    %c0_0 = arith.constant 0 : index
    %0 = vector.load %arg1[%c0, %c0_0] : memref<4x32xf32, #tpu.memory_space<vmem>>, vector<4x32xf32>
    %c0_1 = arith.constant 0 : index
    %c0_2 = arith.constant 0 : index
    %1 = vector.load %arg4[%c0_1, %c0_2] : memref<32x64xf32, #tpu.memory_space<vmem>>, vector<32x64xf32>
    %cst = arith.constant dense<0.000000e+00> : vector<4x64xf32>
    %2 = tpu.matmul %0, %1, %cst {dimension_numbers = #tpu.dot_dimension_numbers<[1], [0], [0], [1], [0, 0, 1, 1], [], []>} : vector<4x32xf32>, vector<32x64xf32>, vector<4x64xf32> -> vector<4x64xf32>
    %c0_3 = arith.constant 0 : index
    %c0_4 = arith.constant 0 : index
    %3 = vector.load %arg2[%c0_3, %c0_4] : memref<4x48xf32, #tpu.memory_space<vmem>>, vector<4x48xf32>
    %c0_5 = arith.constant 0 : index
    %c0_6 = arith.constant 0 : index
    %4 = vector.load %arg5[%c0_5, %c0_6] : memref<48x64xf32, #tpu.memory_space<vmem>>, vector<48x64xf32>
    %cst_7 = arith.constant dense<0.000000e+00> : vector<4x64xf32>
    %5 = tpu.matmul %3, %4, %cst_7 {dimension_numbers = #tpu.dot_dimension_numbers<[1], [0], [0], [1], [0, 0, 1, 1], [], []>} : vector<4x48xf32>, vector<48x64xf32>, vector<4x64xf32> -> vector<4x64xf32>
    %6 = arith.addf %2, %5 : vector<4x64xf32>
    %c0_8 = arith.constant 0 : index
    %c0_9 = arith.constant 0 : index
    %7 = vector.load %arg3[%c0_8, %c0_9] : memref<4x16xf32, #tpu.memory_space<vmem>>, vector<4x16xf32>
    %c0_10 = arith.constant 0 : index
    %c0_11 = arith.constant 0 : index
    %8 = vector.load %arg6[%c0_10, %c0_11] : memref<16x64xf32, #tpu.memory_space<vmem>>, vector<16x64xf32>
    %cst_12 = arith.constant dense<0.000000e+00> : vector<4x64xf32>
    %9 = tpu.matmul %7, %8, %cst_12 {dimension_numbers = #tpu.dot_dimension_numbers<[1], [0], [0], [1], [0, 0, 1, 1], [], []>} : vector<4x16xf32>, vector<16x64xf32>, vector<4x64xf32> -> vector<4x64xf32>
    %10 = arith.addf %6, %9 : vector<4x64xf32>
    %c0_13 = arith.constant 0 : index
    %c0_14 = arith.constant 0 : index
    %11 = vector.load %arg7[%c0_13, %c0_14] : memref<1x64xf32, #tpu.memory_space<vmem>>, vector<1x64xf32>
    %12 = vector.broadcast %11 : vector<1x64xf32> to vector<4x64xf32>
    %13 = arith.addf %10, %12 : vector<4x64xf32>
    %cst_15 = arith.constant 0.000000e+00 : f32
    %14 = vector.broadcast %cst_15 : f32 to vector<4x64xf32>
    %15 = arith.maximumf %13, %14 : vector<4x64xf32>
    %c0_16 = arith.constant 0 : index
    %c0_17 = arith.constant 0 : index
    %16 = vector.load %arg8[%c0_16, %c0_17] : memref<4x64xf32, #tpu.memory_space<vmem>>, vector<4x64xf32>
    tpu.vector_store %arg8[%c0_16, %c0_17], %15 {strides = array<i32>} : memref<4x64xf32, #tpu.memory_space<vmem>>, vector<4x64xf32>,
    return
  }
  func.func @transform_0(%arg0: i32) -> (i32, i32) {
    %c0_i32 = arith.constant 0 : i32
    %c0_i32_0 = arith.constant 0 : i32
    %c0_i32_1 = arith.constant 0 : i32
    return %c0_i32, %c0_i32_0 : i32, i32
  }
  func.func @transform_1(%arg0: i32) -> (i32, i32) {
    %c0_i32 = arith.constant 0 : i32
    %c0_i32_0 = arith.constant 0 : i32
    %c0_i32_1 = arith.constant 0 : i32
    return %c0_i32, %c0_i32_0 : i32, i32
  }
  func.func @transform_2(%arg0: i32) -> (i32, i32) {
    %c0_i32 = arith.constant 0 : i32
    %c0_i32_0 = arith.constant 0 : i32
    %c0_i32_1 = arith.constant 0 : i32
    return %c0_i32, %c0_i32_0 : i32, i32
  }
  func.func @transform_3(%arg0: i32) -> (i32, i32) {
    %c0_i32 = arith.constant 0 : i32
    %c0_i32_0 = arith.constant 0 : i32
    %c0_i32_1 = arith.constant 0 : i32
    return %c0_i32, %c0_i32_0 : i32, i32
  }
  func.func @transform_4(%arg0: i32) -> (i32, i32) {
    %c0_i32 = arith.constant 0 : i32
    %c0_i32_0 = arith.constant 0 : i32
    %c0_i32_1 = arith.constant 0 : i32
    return %c0_i32, %c0_i32_0 : i32, i32
  }
  func.func @transform_5(%arg0: i32) -> (i32, i32) {
    %c0_i32 = arith.constant 0 : i32
    %c0_i32_0 = arith.constant 0 : i32
    %c0_i32_1 = arith.constant 0 : i32
    return %c0_i32, %c0_i32_0 : i32, i32
  }
  func.func @transform_6(%arg0: i32) -> (i32, i32) {
    %c0_i32 = arith.constant 0 : i32
    %c0_i32_0 = arith.constant 0 : i32
    %c0_i32_1 = arith.constant 0 : i32
    return %c0_i32, %c0_i32_0 : i32, i32
  }
  func.func @transform_7(%arg0: i32) -> (i32, i32) {
    %c0_i32 = arith.constant 0 : i32
    %c0_i32_0 = arith.constant 0 : i32
    %c0_i32_1 = arith.constant 0 : i32
    return %c0_i32, %c0_i32_0 : i32, i32
  }
}

</mosaic_0001>

<llo_original>
// kernel: tpu_custom_call.1
$region0: #{tpu_custom_call.1}
  #allocation0 [shape = 'u32[]', space=smem, size = 0x4, offset = 0x4, fixed_abs, tag = 'smem constant byte address 0x4 - core index']
  #allocation1 [shape = 'u32[144,128]{1,0:T(1,128)}', space=vmem, size = 0x12000, scoped, tag = 'internal scratch']
  %s0 = inlined_call_operand.hbm [shape: f32[4,32], index: 0, kind: input, shape index: {}]
  %s1 = inlined_call_operand.hbm [shape: f32[4,48], index: 1, kind: input, shape index: {}]
  %s2 = inlined_call_operand.hbm [shape: f32[4,16], index: 2, kind: input, shape index: {}]
  %s3 = inlined_call_operand.hbm [shape: f32[32,64], index: 3, kind: input, shape index: {}]
  %s4 = inlined_call_operand.hbm [shape: f32[48,64], index: 4, kind: input, shape index: {}]
  %s5 = inlined_call_operand.hbm [shape: f32[16,64], index: 5, kind: input, shape index: {}]
  %s6 = inlined_call_operand.vmem [shape: f32[1,64], index: 6, kind: input, shape index: {}]
  %s7 = inlined_call_operand.hbm [shape: f32[4,64], index: 7, kind: output, shape index: {}]
  %s8 = sld [smem:[#allocation0]]
  $region62: #{tpu_custom_call.1} parent=0
    _
  %s10 = ssub.s32 1, %s8
  %s11 = scalar_select 0, %s10, %s8
  $region1: #{tpu_custom_call.1} parent=0
    #allocation2 [shape = 'u8[2048]{0}', space=vmem, size = 0x800, scoped, tag = 'input window, operand 0, single buffered']
    #allocation3 [shape = 's32[1]{0}', space=sflag, size = 0x4, scoped, tag = 'scoped memory for tpu_custom_call.1']
    #allocation4 [shape = 's32[1]{0}', space=sflag, size = 0x4, scoped, tag = 'scoped memory for tpu_custom_call.1']
    #allocation5 [shape = 'u8[2048]{0}', space=vmem, size = 0x800, scoped, tag = 'input window, operand 1, single buffered']
    #allocation6 [shape = 's32[1]{0}', space=sflag, size = 0x4, scoped, tag = 'scoped memory for tpu_custom_call.1']
    #allocation7 [shape = 'u8[2048]{0}', space=vmem, size = 0x800, scoped, tag = 'input window, operand 2, single buffered']
    #allocation8 [shape = 'u8[16384]{0}', space=vmem, size = 0x4000, scoped, tag = 'input window, operand 3, single buffered']
    #allocation9 [shape = 's32[1]{0}', space=sflag, size = 0x4, scoped, tag = 'scoped memory for tpu_custom_call.1']
    #allocation10 [shape = 'u8[24576]{0}', space=vmem, size = 0x6000, scoped, tag = 'input window, operand 4, single buffered']
    #allocation11 [shape = 'u8[8192]{0}', space=vmem, size = 0x2000, scoped, tag = 'input window, operand 5, single buffered']
    #allocation12 [shape = 's32[1]{0}', space=sflag, size = 0x4, scoped, tag = 'scoped memory for tpu_custom_call.1']
    #allocation13 [shape = 'u8[2048]{0}', space=vmem, size = 0x800, scoped, tag = 'output window, operand 0, single buffered']
    %12 = vsyncpa [#allocation3], 0
    %13 = vsyncpa [#allocation6], 0
    %14 = vsyncpa [#allocation9], 0
    %15 = vsyncpa [#allocation12], 0
    %16 = vsyncpa [#allocation4], 0
    // Predicated region
    $region2: #{tpu_custom_call.1} parent=1 // pred_check
      _
    $region3: #{tpu_custom_call.1} parent=1 // pred_check_branch
      %18 = sbr.rel (0) target = $region5
    $region4: #{tpu_custom_call.1} parent=1 // pred_region
      %s20 = ssub.s32 64, 64
      %21 = vsyncadd [#allocation3], %s20
      %s23 = sshll.u32 [#allocation2], 4
      %s24 = int_to_ptr.vmem [resolvable:$true] %s23
      %26 = dma.hbm_to_vmem [thread:$0]  %s0, 64, %s24, [#allocation3]
    $region5: #{tpu_custom_call.1} parent=1 // pred_fallthru
      _
    // Predicated region
    $region6: #{tpu_custom_call.1} parent=1 // pred_check
      _
    $region7: #{tpu_custom_call.1} parent=1 // pred_check_branch
      %28 = sbr.rel (0) target = $region9
    $region8: #{tpu_custom_call.1} parent=1 // pred_region
      %s30 = ssub.s32 64, 64
      %31 = vsyncadd [#allocation6], %s30
      %s33 = sshll.u32 [#allocation5], 4
      %s34 = int_to_ptr.vmem [resolvable:$true] %s33
      %36 = dma.hbm_to_vmem [thread:$0]  %s1, 64, %s34, [#allocation6]
    $region9: #{tpu_custom_call.1} parent=1 // pred_fallthru
      _
    // Predicated region
    $region10: #{tpu_custom_call.1} parent=1 // pred_check
      _
    $region11: #{tpu_custom_call.1} parent=1 // pred_check_branch
      %38 = sbr.rel (0) target = $region13
    $region12: #{tpu_custom_call.1} parent=1 // pred_region
      %s40 = ssub.s32 64, 64
      %41 = vsyncadd [#allocation6], %s40
      %s43 = sshll.u32 [#allocation7], 4
      %s44 = int_to_ptr.vmem [resolvable:$true] %s43
      %46 = dma.hbm_to_vmem [thread:$0]  %s2, 64, %s44, [#allocation6]
    $region13: #{tpu_custom_call.1} parent=1 // pred_fallthru
      _
    // Predicated region
    $region14: #{tpu_custom_call.1} parent=1 // pred_check
      _
    $region15: #{tpu_custom_call.1} parent=1 // pred_check_branch
      %48 = sbr.rel (0) target = $region17
    $region16: #{tpu_custom_call.1} parent=1 // pred_region
      %s50 = ssub.s32 512, 512
      %51 = vsyncadd [#allocation9], %s50
      %s52 = sshll.u32 [#allocation8], 4
      %s53 = int_to_ptr.vmem [resolvable:$true] %s52
      %58 = dma.hbm_to_vmem [thread:$0]  %s3, 512, %s53, [#allocation9], 128, 128, 8
    $region17: #{tpu_custom_call.1} parent=1 // pred_fallthru
      _
    // Predicated region
    $region18: #{tpu_custom_call.1} parent=1 // pred_check
      _
    $region19: #{tpu_custom_call.1} parent=1 // pred_check_branch
      %60 = sbr.rel (0) target = $region21
    $region20: #{tpu_custom_call.1} parent=1 // pred_region
      %s62 = ssub.s32 768, 768
      %63 = vsyncadd [#allocation9], %s62
      %s64 = sshll.u32 [#allocation10], 4
      %s65 = int_to_ptr.vmem [resolvable:$true] %s64
      %70 = dma.hbm_to_vmem [thread:$0]  %s4, 768, %s65, [#allocation9], 128, 128, 8
    $region21: #{tpu_custom_call.1} parent=1 // pred_fallthru
      _
    // Predicated region
    $region22: #{tpu_custom_call.1} parent=1 // pred_check
      _
    $region23: #{tpu_custom_call.1} parent=1 // pred_check_branch
      %72 = sbr.rel (0) target = $region25
    $region24: #{tpu_custom_call.1} parent=1 // pred_region
      %s74 = ssub.s32 256, 256
      %75 = vsyncadd [#allocation12], %s74
      %s76 = sshll.u32 [#allocation11], 4
      %s77 = int_to_ptr.vmem [resolvable:$true] %s76
      %82 = dma.hbm_to_vmem [thread:$0]  %s5, 256, %s77, [#allocation12], 128, 128, 8
    $region25: #{tpu_custom_call.1} parent=1 // pred_fallthru
      _
    // Predicated region
    $region26: #{tpu_custom_call.1} parent=1 // pred_check
      _
    $region27: #{tpu_custom_call.1} parent=1 // pred_check_branch
      %84 = sbr.rel (0) target = $region29
    $region28: #{tpu_custom_call.1} parent=1 // pred_region
      _
    $region29: #{tpu_custom_call.1} parent=1 // pred_fallthru
      _
    // Predicated region
    $region30: #{tpu_custom_call.1} parent=1 // pred_check
      _
    $region31: #{tpu_custom_call.1} parent=1 // pred_check_branch
      %86 = sbr.rel (0) target = $region33
    $region32: #{tpu_custom_call.1} parent=1 // pred_region
      %87 = dma.done [#allocation3], 64
    $region33: #{tpu_custom_call.1} parent=1 // pred_fallthru
      _
    // Predicated region
    $region34: #{tpu_custom_call.1} parent=1 // pred_check
      _
    $region35: #{tpu_custom_call.1} parent=1 // pred_check_branch
      %89 = sbr.rel (0) target = $region37
    $region36: #{tpu_custom_call.1} parent=1 // pred_region
      %90 = dma.done [#allocation6], 64
    $region37: #{tpu_custom_call.1} parent=1 // pred_fallthru
      _
    // Predicated region
    $region38: #{tpu_custom_call.1} parent=1 // pred_check
      _
    $region39: #{tpu_custom_call.1} parent=1 // pred_check_branch
      %92 = sbr.rel (0) target = $region41
    $region40: #{tpu_custom_call.1} parent=1 // pred_region
      %93 = dma.done [#allocation6], 64
    $region41: #{tpu_custom_call.1} parent=1 // pred_fallthru
      _
    // Predicated region
    $region42: #{tpu_custom_call.1} parent=1 // pred_check
      _
    $region43: #{tpu_custom_call.1} parent=1 // pred_check_branch
      %95 = sbr.rel (0) target = $region45
    $region44: #{tpu_custom_call.1} parent=1 // pred_region
      %96 = dma.done [#allocation9], 512
    $region45: #{tpu_custom_call.1} parent=1 // pred_fallthru
      _
    // Predicated region
    $region46: #{tpu_custom_call.1} parent=1 // pred_check
      _
    $region47: #{tpu_custom_call.1} parent=1 // pred_check_branch
      %98 = sbr.rel (0) target = $region49
    $region48: #{tpu_custom_call.1} parent=1 // pred_region
      %99 = dma.done [#allocation9], 768
    $region49: #{tpu_custom_call.1} parent=1 // pred_fallthru
      _
    // Predicated region
    $region50: #{tpu_custom_call.1} parent=1 // pred_check
      _
    $region51: #{tpu_custom_call.1} parent=1 // pred_check_branch
      %101 = sbr.rel (0) target = $region53
    $region52: #{tpu_custom_call.1} parent=1 // pred_region
      %102 = dma.done [#allocation12], 256
    $region53: #{tpu_custom_call.1} parent=1 // pred_fallthru
      _
    %v103 = vld [vmem:[#allocation2] sm:$0xf]
    %v104 = vld [vmem:[#allocation8] sm:$0xff]
    %v105 = vld [vmem:[#allocation8 + $0x8] sm:$0xff]
    %v106 = vld [vmem:[#allocation8 + $0x10] sm:$0xff]
    %v107 = vld [vmem:[#allocation8 + $0x18] sm:$0xff]
    %v108 = vld [vmem:[#allocation5] sm:$0xf]
    %v109 = vld [vmem:[#allocation10] sm:$0xff]
    %v110 = vld [vmem:[#allocation10 + $0x8] sm:$0xff]
    %v111 = vld [vmem:[#allocation10 + $0x10] sm:$0xff]
    %v112 = vld [vmem:[#allocation10 + $0x18] sm:$0xff]
    %v113 = vld [vmem:[#allocation10 + $0x20] sm:$0xff]
    %v114 = vld [vmem:[#allocation10 + $0x28] sm:$0xff]
    %vm115 = vcmask 392192
    %v117 = vsel %vm115, %v108, 0
    %119 = vmatprep.subr.mxu0 0.0
    %120 = vmatpush1.msra.mxu0 0.0
    %121 = vmatprep.subr.mxu0 0.0
    %122 = vmatpush1.msra.mxu0 0.0
    %123 = vmatprep.subr.mxu0 0.0
    %124 = vmatpush1.msra.mxu0 0.0
    %125 = vmatprep.subr.mxu0 0.0
    %126 = vmatpush1.msra.mxu0 0.0
    %127 = vmatprep.subr.mxu0 0.0
    %128 = vmatpush1.msra.mxu0 0.0
    %129 = vmatprep.subr.mxu0 0.0
    %130 = vmatpush1.msra.mxu0 0.0
    %131 = vmatprep.subr.mxu0 0.0
    %132 = vmatpush1.msra.mxu0 0.0
    %133 = vmatprep.subr.mxu0 0.0
    %134 = vmatpush1.msra.mxu0 0.0
    %135 = vmatprep.subr.mxu0 0.0
    %136 = vmatpush1.msra.mxu0 0.0
    %137 = vmatprep.subr.mxu0 0.0
    %138 = vmatpush1.msra.mxu0 0.0
    %139 = vmatprep.subr.mxu0 0.0
    %140 = vmatpush1.msra.mxu0 %v114
    %141 = vmatprep.subr.mxu0 0.0
    %142 = vmatpush1.msra.mxu0 %v113
    %143 = vmatprep.subr.mxu0 0.0
    %144 = vmatpush1.msra.mxu0 %v112
    %145 = vmatprep.subr.mxu0 0.0
    %146 = vmatpush1.msra.mxu0 %v111
    %147 = vmatprep.subr.mxu0 0.0
    %148 = vmatpush1.msra.mxu0 %v110
    %149 = vmatprep.subr.mxu0 0.0
    %150 = vmatpush1.msra.mxu0 %v109
    %151 = vmatprep.subr.mxu0 0.0
    %152 = vmatpush2.msra.mxu0 0.0
    %153 = vmatprep.subr.mxu0 0.0
    %154 = vmatpush2.msra.mxu0 0.0
    %155 = vmatprep.subr.mxu0 0.0
    %156 = vmatpush2.msra.mxu0 0.0
    %157 = vmatprep.subr.mxu0 0.0
    %158 = vmatpush2.msra.mxu0 0.0
    %159 = vmatprep.subr.mxu0 0.0
    %160 = vmatpush2.msra.mxu0 0.0
    %161 = vmatprep.subr.mxu0 0.0
    %162 = vmatpush2.msra.mxu0 0.0
    %163 = vmatprep.subr.mxu0 0.0
    %164 = vmatpush2.msra.mxu0 0.0
    %165 = vmatprep.subr.mxu0 0.0
    %166 = vmatpush2.msra.mxu0 0.0
    %167 = vmatprep.subr.mxu0 0.0
    %168 = vmatpush2.msra.mxu0 0.0
    %169 = vmatprep.subr.mxu0 0.0
    %170 = vmatpush2.msra.mxu0 0.0
    %171 = vmatprep.subr.mxu0 0.0
    %172 = vmatpush2.msra.mxu0 0.0
    %173 = vmatprep.subr.mxu0 0.0
    %174 = vmatpush2.msra.mxu0 0.0
    %175 = vmatprep.subr.mxu0 0.0
    %176 = vmatpush2.msra.mxu0 0.0
    %177 = vmatprep.subr.mxu0 0.0
    %178 = vmatpush2.msra.mxu0 0.0
    %179 = vmatprep.subr.mxu0 0.0
    %180 = vmatpush2.msra.mxu0 0.0
    %181 = vmatprep.subr.mxu0 0.0
    %182 = vmatpush2.msra.mxu0 0.0
    %183 = vmatprep.mubr.f32.mxu0 0.0
    %184 = vmatmul.mubr.f32.gmra.mxu0 %v117
    %v185 = vpop.f32.mrf.mxu0
    %v186 = vadd.f32 0.0, %v185
    %v187 = vpop.f32.mrf.mxu0
    %188 = vdwg.mxu0
    %vm189 = vcmask 261120
    %v191 = vsel %vm189, %v103, 0
    %193 = vmatprep.subr.mxu0 0.0
    %194 = vmatpush1.msra.mxu0 0.0
    %195 = vmatprep.subr.mxu0 0.0
    %196 = vmatpush1.msra.mxu0 0.0
    %197 = vmatprep.subr.mxu0 0.0
    %198 = vmatpush1.msra.mxu0 0.0
    %199 = vmatprep.subr.mxu0 0.0
    %200 = vmatpush1.msra.mxu0 0.0
    %201 = vmatprep.subr.mxu0 0.0
    %202 = vmatpush1.msra.mxu0 0.0
    %203 = vmatprep.subr.mxu0 0.0
    %204 = vmatpush1.msra.mxu0 0.0
    %205 = vmatprep.subr.mxu0 0.0
    %206 = vmatpush1.msra.mxu0 0.0
    %207 = vmatprep.subr.mxu0 0.0
    %208 = vmatpush1.msra.mxu0 0.0
    %209 = vmatprep.subr.mxu0 0.0
    %210 = vmatpush1.msra.mxu0 0.0
    %211 = vmatprep.subr.mxu0 0.0
    %212 = vmatpush1.msra.mxu0 0.0
    %213 = vmatprep.subr.mxu0 0.0
    %214 = vmatpush1.msra.mxu0 0.0
    %215 = vmatprep.subr.mxu0 0.0
    %216 = vmatpush1.msra.mxu0 0.0
    %217 = vmatprep.subr.mxu0 0.0
    %218 = vmatpush1.msra.mxu0 %v107
    %219 = vmatprep.subr.mxu0 0.0
    %220 = vmatpush1.msra.mxu0 %v106
    %221 = vmatprep.subr.mxu0 0.0
    %222 = vmatpush1.msra.mxu0 %v105
    %223 = vmatprep.subr.mxu0 0.0
    %224 = vmatpush1.msra.mxu0 %v104
    %225 = vmatprep.subr.mxu0 0.0
    %226 = vmatpush2.msra.mxu0 0.0
    %227 = vmatprep.subr.mxu0 0.0
    %228 = vmatpush2.msra.mxu0 0.0
    %229 = vmatprep.subr.mxu0 0.0
    %230 = vmatpush2.msra.mxu0 0.0
    %231 = vmatprep.subr.mxu0 0.0
    %232 = vmatpush2.msra.mxu0 0.0
    %233 = vmatprep.subr.mxu0 0.0
    %234 = vmatpush2.msra.mxu0 0.0
    %235 = vmatprep.subr.mxu0 0.0
    %236 = vmatpush2.msra.mxu0 0.0
    %237 = vmatprep.subr.mxu0 0.0
    %238 = vmatpush2.msra.mxu0 0.0
    %239 = vmatprep.subr.mxu0 0.0
    %240 = vmatpush2.msra.mxu0 0.0
    %241 = vmatprep.subr.mxu0 0.0
    %242 = vmatpush2.msra.mxu0 0.0
    %243 = vmatprep.subr.mxu0 0.0
    %244 = vmatpush2.msra.mxu0 0.0
    %245 = vmatprep.subr.mxu0 0.0
    %246 = vmatpush2.msra.mxu0 0.0
    %247 = vmatprep.subr.mxu0 0.0
    %248 = vmatpush2.msra.mxu0 0.0
    %249 = vmatprep.subr.mxu0 0.0
    %250 = vmatpush2.msra.mxu0 0.0
    %251 = vmatprep.subr.mxu0 0.0
    %252 = vmatpush2.msra.mxu0 0.0
    %253 = vmatprep.subr.mxu0 0.0
    %254 = vmatpush2.msra.mxu0 0.0
    %255 = vmatprep.subr.mxu0 0.0
    %256 = vmatpush2.msra.mxu0 0.0
    %257 = vmatprep.mubr.f32.mxu0 0.0
    %258 = vmatmul.mubr.f32.gmra.mxu0 %v191
    %v259 = vpop.f32.mrf.mxu0
    %v260 = vadd.f32 %v186, %v259
    %v261 = vpop.f32.mrf.mxu0
    %262 = vdwg.mxu0
    %v263 = vld [vmem:[#allocation7] sm:$0xf]
    %v264 = vld [vmem:[#allocation11] sm:$0xff]
    %v265 = vld [vmem:[#allocation11 + $0x8] sm:$0xff]
    %vm266 = vcmask 130048
    %v268 = vsel %vm266, %v263, 0
    %270 = vmatprep.subr.mxu0 0.0
    %271 = vmatpush1.msra.mxu0 0.0
    %272 = vmatprep.subr.mxu0 0.0
    %273 = vmatpush1.msra.mxu0 0.0
    %274 = vmatprep.subr.mxu0 0.0
    %275 = vmatpush1.msra.mxu0 0.0
    %276 = vmatprep.subr.mxu0 0.0
    %277 = vmatpush1.msra.mxu0 0.0
    %278 = vmatprep.subr.mxu0 0.0
    %279 = vmatpush1.msra.mxu0 0.0
    %280 = vmatprep.subr.mxu0 0.0
    %281 = vmatpush1.msra.mxu0 0.0
    %282 = vmatprep.subr.mxu0 0.0
    %283 = vmatpush1.msra.mxu0 0.0
    %284 = vmatprep.subr.mxu0 0.0
    %285 = vmatpush1.msra.mxu0 0.0
    %286 = vmatprep.subr.mxu0 0.0
    %287 = vmatpush1.msra.mxu0 0.0
    %288 = vmatprep.subr.mxu0 0.0
    %289 = vmatpush1.msra.mxu0 0.0
    %290 = vmatprep.subr.mxu0 0.0
    %291 = vmatpush1.msra.mxu0 0.0
    %292 = vmatprep.subr.mxu0 0.0
    %293 = vmatpush1.msra.mxu0 0.0
    %294 = vmatprep.subr.mxu0 0.0
    %295 = vmatpush1.msra.mxu0 0.0
    %296 = vmatprep.subr.mxu0 0.0
    %297 = vmatpush1.msra.mxu0 0.0
    %298 = vmatprep.subr.mxu0 0.0
    %299 = vmatpush1.msra.mxu0 %v265
    %300 = vmatprep.subr.mxu0 0.0
    %301 = vmatpush1.msra.mxu0 %v264
    %302 = vmatprep.subr.mxu0 0.0
    %303 = vmatpush2.msra.mxu0 0.0
    %304 = vmatprep.subr.mxu0 0.0
    %305 = vmatpush2.msra.mxu0 0.0
    %306 = vmatprep.subr.mxu0 0.0
    %307 = vmatpush2.msra.mxu0 0.0
    %308 = vmatprep.subr.mxu0 0.0
    %309 = vmatpush2.msra.mxu0 0.0
    %310 = vmatprep.subr.mxu0 0.0
    %311 = vmatpush2.msra.mxu0 0.0
    %312 = vmatprep.subr.mxu0 0.0
    %313 = vmatpush2.msra.mxu0 0.0
    %314 = vmatprep.subr.mxu0 0.0
    %315 = vmatpush2.msra.mxu0 0.0
    %316 = vmatprep.subr.mxu0 0.0
    %317 = vmatpush2.msra.mxu0 0.0
    %318 = vmatprep.subr.mxu0 0.0
    %319 = vmatpush2.msra.mxu0 0.0
    %320 = vmatprep.subr.mxu0 0.0
    %321 = vmatpush2.msra.mxu0 0.0
    %322 = vmatprep.subr.mxu0 0.0
    %323 = vmatpush2.msra.mxu0 0.0
    %324 = vmatprep.subr.mxu0 0.0
    %325 = vmatpush2.msra.mxu0 0.0
    %326 = vmatprep.subr.mxu0 0.0
    %327 = vmatpush2.msra.mxu0 0.0
    %328 = vmatprep.subr.mxu0 0.0
    %329 = vmatpush2.msra.mxu0 0.0
    %330 = vmatprep.subr.mxu0 0.0
    %331 = vmatpush2.msra.mxu0 0.0
    %332 = vmatprep.subr.mxu0 0.0
    %333 = vmatpush2.msra.mxu0 0.0
    %334 = vmatprep.mubr.f32.mxu0 0.0
    %335 = vmatmul.mubr.f32.gmra.mxu0 %v268
    %v336 = vpop.f32.mrf.mxu0
    %v337 = vadd.f32 0.0, %v336
    %v338 = vpop.f32.mrf.mxu0
    %339 = vdwg.mxu0
    %v340 = vadd.f32 %v260, %v337
    %v341 = vld [vmem:[%s6] sm:$0x1]
    %v343 = vlaneseq
    %v344 = vshrl.u32 %v343, 7
    %v345 = vsub.s32 0, %v344
    %v346 = vrot.slane %v341, %v345
    %v348 = vadd.f32 %v340, %v346
    %v349 = vmax.f32 %v348, 0.0
    %vm350 = vcmask 519168
    %351 = vst.msk [vmem:[#allocation13] sm:$0xf] %vm350, %v349
    // Predicated region
    $region54: #{tpu_custom_call.1} parent=1 // pred_check
      _
    $region55: #{tpu_custom_call.1} parent=1 // pred_check_branch
      %353 = sbr.rel (0) target = $region57
    $region56: #{tpu_custom_call.1} parent=1 // pred_region
      %s355 = ssub.s32 64, 64
      %356 = vsyncadd [#allocation4], %s355
      %s358 = sshll.u32 [#allocation13], 4
      %s359 = int_to_ptr.vmem [resolvable:$true] %s358
      %361 = dma.vmem_to_hbm [thread:$0]  %s359, 64, %s7, [#allocation4]
    $region57: #{tpu_custom_call.1} parent=1 // pred_fallthru
      _
    // Predicated region
    $region58: #{tpu_custom_call.1} parent=1 // pred_check
      _
    $region59: #{tpu_custom_call.1} parent=1 // pred_check_branch
      %363 = sbr.rel (0) target = $region61
    $region60: #{tpu_custom_call.1} parent=1 // pred_region
      %364 = dma.done [#allocation4], 64
    $region61: #{tpu_custom_call.1} parent=1 // pred_fallthru
      _
    %365 = vsyncpa [#allocation3], 1
    %366 = vsyncpa [#allocation6], 1
    %367 = vsyncpa [#allocation9], 1
    %368 = vsyncpa [#allocation12], 1
    %369 = vsyncpa [#allocation4], 1

</llo_original>
